<compile_context>
chip_gen: v7x
topology: tpu7x:2x2x1
jax: 0.10.0
libtpu: 0.0.40
codegen_flags: <defaults>
</compile_context>

<pallas_src>
import functools

import jax
import jax.numpy as jnp
from jax.experimental import pallas as pl
from jax.experimental.pallas import tpu as pltpu

LANE = 128      # TPU lane width: hidden/output feature dims padded to this.
SUBLANE = 8     # sublane granularity: batch tiles / layer-1 K padded to this.
MAX_TM = 1024   # cap on rows per batch tile (keeps per-step VMEM tiny).


def _round_up(n, m):
    return ((n + m - 1) // m) * m


def _pad_to(a, shape):
    pads = [(0, s - d) for d, s in zip(a.shape, shape)]
    return jnp.pad(a, pads)


def _guess_num_tensorcores():
    """2 TensorCores on v7x, 1 on v5e/v6e; safe fallback of 1."""
    try:
        kind = jax.devices()[0].device_kind.lower()
    except Exception:
        return 1
    if "v7" in kind or "7x" in kind:
        return 2
    return 1


def _pick_tiling(batch, num_cores):
    """One batch tile per TensorCore (capped at MAX_TM rows)."""
    rows = _round_up(max(batch, SUBLANE), SUBLANE)
    tm = _round_up(pl.cdiv(rows, num_cores), SUBLANE)
    tm = min(tm, MAX_TM)
    padded_batch = _round_up(rows, tm)
    return tm, padded_batch


# ---------------------------------------------------------------------------
# Kernel: one (tm, *) batch tile of the forward pass; weights resident in VMEM.
# ---------------------------------------------------------------------------
def qnetwork_kernel(x_ref, w1_ref, b1_ref, w2_ref, b2_ref, w3_ref, b3_ref, out_ref):
    x = x_ref[...]                                                   # (tm, f_in) bf16

    # hidden layer 1: relu(x @ W1 + b1)  -- f32 accumulation on the MXU
    h1 = jnp.dot(x, w1_ref[...], preferred_element_type=jnp.float32) + b1_ref[...]
    h1 = jnp.maximum(h1, 0.0).astype(jnp.bfloat16)

    # hidden layer 2: relu(h1 @ W2 + b2)
    h2 = jnp.dot(h1, w2_ref[...], preferred_element_type=jnp.float32) + b2_ref[...]
    h2 = jnp.maximum(h2, 0.0).astype(jnp.bfloat16)

    # output layer: h2 @ W3 + b3 (no activation); lane-dense bf16 store
    q = jnp.dot(h2, w3_ref[...], preferred_element_type=jnp.float32) + b3_ref[...]
    out_ref[...] = q.astype(out_ref.dtype)


# ---------------------------------------------------------------------------
# One-time parameter preparation (pad + cast) -- keep OUT of the hot path.
# ---------------------------------------------------------------------------
def prepare_params(params):
    """params = ((w1,b1),(w2,b2),(w3,b3)); W is (in,out) f32, b is (1,out) f32.

    Returns (weights, sizes):
      weights : (w1,b1,w2,b2,w3,b3) padded (lane-dense hidden/output dims,
                sublane-aligned layer-1 K) and cast to bf16 W / f32 b.
      sizes   : (state_size, h1, h2, action_size) python ints (static).
    """
    (w1, b1), (w2, b2), (w3, b3) = params
    state_size, h1_size = w1.shape
    h2_size = w2.shape[1]
    action_size = w3.shape[1]

    f_in = _round_up(state_size, SUBLANE)   # contraction dim: sublane-aligned only
    f_h1 = _round_up(h1_size, LANE)
    f_h2 = _round_up(h2_size, LANE)
    f_out = _round_up(action_size, LANE)

    # Zero-padding is semantics-preserving: padded input columns hit zero rows
    # of W1, padded hidden columns have zero weights/biases so stay 0 through
    # ReLU, and padded output columns are discarded by the final slice.
    weights = (
        _pad_to(w1, (f_in, f_h1)).astype(jnp.bfloat16),
        _pad_to(b1, (1, f_h1)).astype(jnp.float32),
        _pad_to(w2, (f_h1, f_h2)).astype(jnp.bfloat16),
        _pad_to(b2, (1, f_h2)).astype(jnp.float32),
        _pad_to(w3, (f_h2, f_out)).astype(jnp.bfloat16),
        _pad_to(b3, (1, f_out)).astype(jnp.float32),
    )
    sizes = (state_size, h1_size, h2_size, action_size)
    return weights, sizes


# ---------------------------------------------------------------------------
# Forward
# ---------------------------------------------------------------------------
@functools.partial(jax.jit, static_argnames=("sizes", "tm", "padded_batch"))
def _qnetwork_forward_padded(x, weights, *, sizes, tm, padded_batch):
    w1_p, b1_p, w2_p, b2_p, w3_p, b3_p = weights
    state_size, h1_size, h2_size, action_size = sizes
    batch = x.shape[0]
    f_in, f_h1 = w1_p.shape
    f_h2 = w2_p.shape[1]
    f_out = w3_p.shape[1]

    # Only the activations are padded/cast per call.
    x_p = _pad_to(x, (padded_batch, f_in)).astype(jnp.bfloat16)

    grid = (padded_batch // tm,)

    # Logical (unpadded) work for XLA's scheduler.
    flops = 2 * batch * (state_size * h1_size + h1_size * h2_size + h2_size * action_size)
    bytes_accessed = (
        2 * batch * state_size                                                    # x bf16
        + 2 * (state_size * h1_size + h1_size * h2_size + h2_size * action_size)  # W bf16
        + 4 * (h1_size + h2_size + action_size)                                   # b f32
        + 2 * batch * action_size                                                 # out bf16
    )

    out_padded = pl.pallas_call(
        qnetwork_kernel,
        out_shape=jax.ShapeDtypeStruct((padded_batch, f_out), jnp.bfloat16),
        grid=grid,
        in_specs=[
            pl.BlockSpec((tm, f_in), lambda i: (i, 0)),      # x: tiled over batch
            pl.BlockSpec((f_in, f_h1), lambda i: (0, 0)),    # W1: VMEM-resident
            pl.BlockSpec((1, f_h1), lambda i: (0, 0)),       # b1: resident
            pl.BlockSpec((f_h1, f_h2), lambda i: (0, 0)),    # W2: resident
            pl.BlockSpec((1, f_h2), lambda i: (0, 0)),       # b2: resident
            pl.BlockSpec((f_h2, f_out), lambda i: (0, 0)),   # W3: resident
            pl.BlockSpec((1, f_out), lambda i: (0, 0)),      # b3: resident
        ],
        out_specs=pl.BlockSpec((tm, f_out), lambda i: (i, 0)),
        compiler_params=pltpu.CompilerParams(
            dimension_semantics=("parallel",),  # shard batch tiles across v7x's 2 TCs
        ),
        cost_estimate=pl.CostEstimate(
            flops=flops, transcendentals=0, bytes_accessed=bytes_accessed
        ),
    )(x_p, w1_p, b1_p, w2_p, b2_p, w3_p, b3_p)

    return out_padded[:batch, :action_size].astype(jnp.float32)


def qnetwork_forward(x, prepared, *, num_tensorcores=None):
    """x: (batch, state_size) f32; prepared: output of prepare_params()."""
    weights, sizes = prepared
    if num_tensorcores is None:
        num_tensorcores = _guess_num_tensorcores()
    tm, padded_batch = _pick_tiling(x.shape[0], num_tensorcores)
    return _qnetwork_forward_padded(
        x, weights, sizes=sizes, tm=tm, padded_batch=padded_batch
    )


# ---------------------------------------------------------------------------
# Init + references
# ---------------------------------------------------------------------------
def init_linear(key, in_features, out_features):
    """Mimic torch.nn.Linear default init: U(-1/sqrt(in), 1/sqrt(in))."""
    kw, kb = jax.random.split(key)
    bound = 1.0 / jnp.sqrt(jnp.float32(in_features))
    # Stored as (in, out) so the kernel does x @ W.
    w = jax.random.uniform(kw, (in_features, out_features), jnp.float32, -bound, bound)
    b = jax.random.uniform(kb, (1, out_features), jnp.float32, -bound, bound)
    return w, b


def reference_forward_f32(x, params):
    (w1, b1), (w2, b2), (w3, b3) = params
    h1 = jnp.maximum(x @ w1 + b1, 0.0)
    h2 = jnp.maximum(h1 @ w2 + b2, 0.0)
    return h2 @ w3 + b3


def reference_forward_bf16(x, params):
    """Same bf16-inputs / f32-accumulation recipe as the kernel."""
    (w1, b1), (w2, b2), (w3, b3) = params
    bf = jnp.bfloat16
    h1 = jnp.dot(x.astype(bf), w1.astype(bf), preferred_element_type=jnp.float32) + b1
    h1 = jnp.maximum(h1, 0.0).astype(bf)
    h2 = jnp.dot(h1, w2.astype(bf), preferred_element_type=jnp.float32) + b2
    h2 = jnp.maximum(h2, 0.0).astype(bf)
    return jnp.dot(h2, w3.astype(bf), preferred_element_type=jnp.float32) + b3


if __name__ == "__main__":
    # Module-consistent small sizes: state_size=8, action_size=4, hidden=[64,64].
    state_size, action_size = 8, 4
    hidden_layers = [64, 64]
    batch = 64

    key = jax.random.PRNGKey(0)
    k_x, k1, k2, k3 = jax.random.split(key, 4)

    x = jax.random.normal(k_x, (batch, state_size), jnp.float32)

    params = (
        init_linear(k1, state_size, hidden_layers[0]),
        init_linear(k2, hidden_layers[0], hidden_layers[1]),
        init_linear(k3, hidden_layers[1], action_size),
    )

    # One-time prep (pad + cast) -- out of the per-call hot path.
    prepared = prepare_params(params)

    q_vals = qnetwork_forward(x, prepared)
    q_vals = jax.block_until_ready(q_vals)
    assert q_vals.shape == (batch, action_size)

    # Tight check vs a matching bf16/f32-acc reference (rounded to bf16 output
    # like the kernel store).
    ref_bf16 = reference_forward_bf16(x, params).astype(jnp.bfloat16).astype(jnp.float32)
    assert jnp.allclose(q_vals, ref_bf16, atol=1e-2, rtol=1e-2), "mismatch vs bf16 reference"

    # Looser check vs the pure-f32 reference (bf16 quantization error only).
    ref_f32 = reference_forward_f32(x, params)
    assert jnp.allclose(q_vals, ref_f32, atol=5e-2, rtol=5e-2), "mismatch vs f32 reference"

    print("KERNEL_OK")
</pallas_src>

<mosaic_0001>
module attributes {stable_mosaic.version = 11 : i64} {
  func.func @qnetwork_kernel(%arg0: i32, %arg1: memref<64x8xbf16, #tpu.memory_space<vmem>>, %arg2: memref<8x128xbf16, #tpu.memory_space<vmem>>, %arg3: memref<1x128xf32, #tpu.memory_space<vmem>>, %arg4: memref<128x128xbf16, #tpu.memory_space<vmem>>, %arg5: memref<1x128xf32, #tpu.memory_space<vmem>>, %arg6: memref<128x128xbf16, #tpu.memory_space<vmem>>, %arg7: memref<1x128xf32, #tpu.memory_space<vmem>>, %arg8: memref<64x128xbf16, #tpu.memory_space<vmem>>) attributes {dimension_semantics = [#tpu.dimension_semantics<parallel>], iteration_bounds = array<i64: 1>, scalar_prefetch = 0 : i64, scratch_operands = 0 : i64, tpu.core_type = #tpu.core_type<tc>, window_params = [{transform_indices = @transform_0, window_bounds = array<i64: 64, 8>}, {pipeline_mode = #tpu.pipeline_mode<synchronous>, transform_indices = @transform_1, window_bounds = array<i64: 8, 128>}, {pipeline_mode = #tpu.pipeline_mode<synchronous>, transform_indices = @transform_2, window_bounds = array<i64: 1, 128>}, {pipeline_mode = #tpu.pipeline_mode<synchronous>, transform_indices = @transform_3, window_bounds = array<i64: 128, 128>}, {pipeline_mode = #tpu.pipeline_mode<synchronous>, transform_indices = @transform_4, window_bounds = array<i64: 1, 128>}, {pipeline_mode = #tpu.pipeline_mode<synchronous>, transform_indices = @transform_5, window_bounds = array<i64: 128, 128>}, {pipeline_mode = #tpu.pipeline_mode<synchronous>, transform_indices = @transform_6, window_bounds = array<i64: 1, 128>}, {transform_indices = @transform_7, window_bounds = array<i64: 64, 128>}]} {
    %c0 = arith.constant 0 : index
    %c0_0 = arith.constant 0 : index
    %0 = vector.load %arg1[%c0, %c0_0] : memref<64x8xbf16, #tpu.memory_space<vmem>>, vector<64x8xbf16>
    %c0_1 = arith.constant 0 : index
    %c0_2 = arith.constant 0 : index
    %1 = vector.load %arg2[%c0_1, %c0_2] : memref<8x128xbf16, #tpu.memory_space<vmem>>, vector<8x128xbf16>
    %cst = arith.constant dense<0.000000e+00> : vector<64x128xf32>
    %2 = tpu.matmul %0, %1, %cst {dimension_numbers = #tpu.dot_dimension_numbers<[1], [0], [0], [1], [0, 0, 1, 1], [], []>} : vector<64x8xbf16>, vector<8x128xbf16>, vector<64x128xf32> -> vector<64x128xf32>
    %c0_3 = arith.constant 0 : index
    %c0_4 = arith.constant 0 : index
    %3 = vector.load %arg3[%c0_3, %c0_4] : memref<1x128xf32, #tpu.memory_space<vmem>>, vector<1x128xf32>
    %4 = vector.broadcast %3 : vector<1x128xf32> to vector<64x128xf32>
    %5 = arith.addf %2, %4 : vector<64x128xf32>
    %cst_5 = arith.constant 0.000000e+00 : f32
    %6 = vector.broadcast %cst_5 : f32 to vector<64x128xf32>
    %7 = arith.maximumf %5, %6 : vector<64x128xf32>
    %8 = arith.truncf %7 : vector<64x128xf32> to vector<64x128xbf16>
    %c0_6 = arith.constant 0 : index
    %c0_7 = arith.constant 0 : index
    %9 = vector.load %arg4[%c0_6, %c0_7] : memref<128x128xbf16, #tpu.memory_space<vmem>>, vector<128x128xbf16>
    %cst_8 = arith.constant dense<0.000000e+00> : vector<64x128xf32>
    %10 = tpu.matmul %8, %9, %cst_8 {dimension_numbers = #tpu.dot_dimension_numbers<[1], [0], [0], [1], [0, 0, 1, 1], [], []>} : vector<64x128xbf16>, vector<128x128xbf16>, vector<64x128xf32> -> vector<64x128xf32>
    %c0_9 = arith.constant 0 : index
    %c0_10 = arith.constant 0 : index
    %11 = vector.load %arg5[%c0_9, %c0_10] : memref<1x128xf32, #tpu.memory_space<vmem>>, vector<1x128xf32>
    %12 = vector.broadcast %11 : vector<1x128xf32> to vector<64x128xf32>
    %13 = arith.addf %10, %12 : vector<64x128xf32>
    %cst_11 = arith.constant 0.000000e+00 : f32
    %14 = vector.broadcast %cst_11 : f32 to vector<64x128xf32>
    %15 = arith.maximumf %13, %14 : vector<64x128xf32>
    %16 = arith.truncf %15 : vector<64x128xf32> to vector<64x128xbf16>
    %c0_12 = arith.constant 0 : index
    %c0_13 = arith.constant 0 : index
    %17 = vector.load %arg6[%c0_12, %c0_13] : memref<128x128xbf16, #tpu.memory_space<vmem>>, vector<128x128xbf16>
    %cst_14 = arith.constant dense<0.000000e+00> : vector<64x128xf32>
    %18 = tpu.matmul %16, %17, %cst_14 {dimension_numbers = #tpu.dot_dimension_numbers<[1], [0], [0], [1], [0, 0, 1, 1], [], []>} : vector<64x128xbf16>, vector<128x128xbf16>, vector<64x128xf32> -> vector<64x128xf32>
    %c0_15 = arith.constant 0 : index
    %c0_16 = arith.constant 0 : index
    %19 = vector.load %arg7[%c0_15, %c0_16] : memref<1x128xf32, #tpu.memory_space<vmem>>, vector<1x128xf32>
    %20 = vector.broadcast %19 : vector<1x128xf32> to vector<64x128xf32>
    %21 = arith.addf %18, %20 : vector<64x128xf32>
    %22 = arith.truncf %21 : vector<64x128xf32> to vector<64x128xbf16>
    %c0_17 = arith.constant 0 : index
    %c0_18 = arith.constant 0 : index
    %23 = vector.load %arg8[%c0_17, %c0_18] : memref<64x128xbf16, #tpu.memory_space<vmem>>, vector<64x128xbf16>
    tpu.vector_store %arg8[%c0_17, %c0_18], %22 {strides = array<i32>} : memref<64x128xbf16, #tpu.memory_space<vmem>>, vector<64x128xbf16>,
    return
  }
  func.func @transform_0(%arg0: i32) -> (i32, i32) {
    %c0_i32 = arith.constant 0 : i32
    %c0_i32_0 = arith.constant 0 : i32
    return %arg0, %c0_i32 : i32, i32
  }
  func.func @transform_1(%arg0: i32) -> (i32, i32) {
    %c0_i32 = arith.constant 0 : i32
    %c0_i32_0 = arith.constant 0 : i32
    %c0_i32_1 = arith.constant 0 : i32
    return %c0_i32, %c0_i32_0 : i32, i32
  }
  func.func @transform_2(%arg0: i32) -> (i32, i32) {
    %c0_i32 = arith.constant 0 : i32
    %c0_i32_0 = arith.constant 0 : i32
    %c0_i32_1 = arith.constant 0 : i32
    return %c0_i32, %c0_i32_0 : i32, i32
  }
  func.func @transform_3(%arg0: i32) -> (i32, i32) {
    %c0_i32 = arith.constant 0 : i32
    %c0_i32_0 = arith.constant 0 : i32
    %c0_i32_1 = arith.constant 0 : i32
    return %c0_i32, %c0_i32_0 : i32, i32
  }
  func.func @transform_4(%arg0: i32) -> (i32, i32) {
    %c0_i32 = arith.constant 0 : i32
    %c0_i32_0 = arith.constant 0 : i32
    %c0_i32_1 = arith.constant 0 : i32
    return %c0_i32, %c0_i32_0 : i32, i32
  }
  func.func @transform_5(%arg0: i32) -> (i32, i32) {
    %c0_i32 = arith.constant 0 : i32
    %c0_i32_0 = arith.constant 0 : i32
    %c0_i32_1 = arith.constant 0 : i32
    return %c0_i32, %c0_i32_0 : i32, i32
  }
  func.func @transform_6(%arg0: i32) -> (i32, i32) {
    %c0_i32 = arith.constant 0 : i32
    %c0_i32_0 = arith.constant 0 : i32
    %c0_i32_1 = arith.constant 0 : i32
    return %c0_i32, %c0_i32_0 : i32, i32
  }
  func.func @transform_7(%arg0: i32) -> (i32, i32) {
    %c0_i32 = arith.constant 0 : i32
    %c0_i32_0 = arith.constant 0 : i32
    return %arg0, %c0_i32 : i32, i32
  }
}

</mosaic_0001>

<llo_original>
// kernel: _qnetwork_forward_padded.1
$region0: #{_qnetwork_forward_padded.1}
  #allocation0 [shape = 'u32[]', space=smem, size = 0x4, offset = 0x4, fixed_abs, tag = 'smem constant byte address 0x4 - core index']
  #allocation1 [shape = 'u32[144,128]{1,0:T(1,128)}', space=vmem, size = 0x12000, scoped, tag = 'internal scratch']
  %s0 = inlined_call_operand.vmem [shape: bf16[64,8], index: 0, kind: input, shape index: {}]
  %s1 = inlined_call_operand.hbm [shape: bf16[8,128], index: 1, kind: input, shape index: {}]
  %s2 = inlined_call_operand.vmem [shape: f32[1,128], index: 2, kind: input, shape index: {}]
  %s3 = inlined_call_operand.hbm [shape: bf16[128,128], index: 3, kind: input, shape index: {}]
  %s4 = inlined_call_operand.vmem [shape: f32[1,128], index: 4, kind: input, shape index: {}]
  %s5 = inlined_call_operand.vmem [shape: bf16[128,128], index: 5, kind: input, shape index: {}]
  %s6 = inlined_call_operand.vmem [shape: f32[1,128], index: 6, kind: input, shape index: {}]
  %s7 = inlined_call_operand.vmem [shape: bf16[64,128], index: 7, kind: output, shape index: {}]
  %s8 = sld [smem:[#allocation0]]
  $region46: #{_qnetwork_forward_padded.1} parent=0
    _
  %s10 = ssub.s32 1, %s8
  %s11 = scalar_select 0, %s10, %s8
  $region1: #{_qnetwork_forward_padded.1} parent=0
    #allocation2 [shape = 'u8[2048]{0}', space=vmem, size = 0x800, scoped, tag = 'input window, operand 1, single buffered']
    #allocation3 [shape = 's32[1]{0}', space=sflag, size = 0x4, scoped, tag = 'scoped memory for _qnetwork_forward_padded.1']
    #allocation4 [shape = 'u8[32768]{0}', space=vmem, size = 0x8000, scoped, tag = 'input window, operand 3, single buffered']
    #allocation5 [shape = 's32[1]{0}', space=sflag, size = 0x4, scoped, tag = 'scoped memory for _qnetwork_forward_padded.1']
    %12 = vsyncpa [#allocation3], 0
    %13 = vsyncpa [#allocation5], 0
    // Predicated region
    $region2: #{_qnetwork_forward_padded.1} parent=1 // pred_check
      _
    $region3: #{_qnetwork_forward_padded.1} parent=1 // pred_check_branch
      %15 = sbr.rel (0) target = $region5
    $region4: #{_qnetwork_forward_padded.1} parent=1 // pred_region
      _
    $region5: #{_qnetwork_forward_padded.1} parent=1 // pred_fallthru
      _
    // Predicated region
    $region6: #{_qnetwork_forward_padded.1} parent=1 // pred_check
      _
    $region7: #{_qnetwork_forward_padded.1} parent=1 // pred_check_branch
      %17 = sbr.rel (0) target = $region9
    $region8: #{_qnetwork_forward_padded.1} parent=1 // pred_region
      %s19 = ssub.s32 64, 64
      %20 = vsyncadd [#allocation3], %s19
      %s22 = sshll.u32 [#allocation2], 4
      %s23 = int_to_ptr.vmem [resolvable:$true] %s22
      %25 = dma.hbm_to_vmem [thread:$0]  %s1, 64, %s23, [#allocation3]
    $region9: #{_qnetwork_forward_padded.1} parent=1 // pred_fallthru
      _
    // Predicated region
    $region10: #{_qnetwork_forward_padded.1} parent=1 // pred_check
      _
    $region11: #{_qnetwork_forward_padded.1} parent=1 // pred_check_branch
      %27 = sbr.rel (0) target = $region13
    $region12: #{_qnetwork_forward_padded.1} parent=1 // pred_region
      _
    $region13: #{_qnetwork_forward_padded.1} parent=1 // pred_fallthru
      _
    // Predicated region
    $region14: #{_qnetwork_forward_padded.1} parent=1 // pred_check
      _
    $region15: #{_qnetwork_forward_padded.1} parent=1 // pred_check_branch
      %29 = sbr.rel (0) target = $region17
    $region16: #{_qnetwork_forward_padded.1} parent=1 // pred_region
      %s31 = ssub.s32 1024, 1024
      %32 = vsyncadd [#allocation5], %s31
      %s33 = sshll.u32 [#allocation4], 4
      %s34 = int_to_ptr.vmem [resolvable:$true] %s33
      %39 = dma.hbm_to_vmem [thread:$0]  %s3, 1024, %s34, [#allocation5], 64, 64, 4
    $region17: #{_qnetwork_forward_padded.1} parent=1 // pred_fallthru
      _
    // Predicated region
    $region18: #{_qnetwork_forward_padded.1} parent=1 // pred_check
      _
    $region19: #{_qnetwork_forward_padded.1} parent=1 // pred_check_branch
      %41 = sbr.rel (0) target = $region21
    $region20: #{_qnetwork_forward_padded.1} parent=1 // pred_region
      _
    $region21: #{_qnetwork_forward_padded.1} parent=1 // pred_fallthru
      _
    // Predicated region
    $region22: #{_qnetwork_forward_padded.1} parent=1 // pred_check
      _
    $region23: #{_qnetwork_forward_padded.1} parent=1 // pred_check_branch
      %43 = sbr.rel (0) target = $region25
    $region24: #{_qnetwork_forward_padded.1} parent=1 // pred_region
      _
    $region25: #{_qnetwork_forward_padded.1} parent=1 // pred_fallthru
      _
    // Predicated region
    $region26: #{_qnetwork_forward_padded.1} parent=1 // pred_check
      _
    $region27: #{_qnetwork_forward_padded.1} parent=1 // pred_check_branch
      %45 = sbr.rel (0) target = $region29
    $region28: #{_qnetwork_forward_padded.1} parent=1 // pred_region
      _
    $region29: #{_qnetwork_forward_padded.1} parent=1 // pred_fallthru
      _
    // Predicated region
    $region30: #{_qnetwork_forward_padded.1} parent=1 // pred_check
      _
    $region31: #{_qnetwork_forward_padded.1} parent=1 // pred_check_branch
      %47 = sbr.rel (0) target = $region33
    $region32: #{_qnetwork_forward_padded.1} parent=1 // pred_region
      %48 = dma.done [#allocation3], 64
    $region33: #{_qnetwork_forward_padded.1} parent=1 // pred_fallthru
      _
    // Predicated region
    $region34: #{_qnetwork_forward_padded.1} parent=1 // pred_check
      _
    $region35: #{_qnetwork_forward_padded.1} parent=1 // pred_check_branch
      %50 = sbr.rel (0) target = $region37
    $region36: #{_qnetwork_forward_padded.1} parent=1 // pred_region
      %51 = dma.done [#allocation5], 1024
    $region37: #{_qnetwork_forward_padded.1} parent=1 // pred_fallthru
      _
    %v53 = vld [vmem:[%s0] sm:$0xf]
    %v54 = vld [vmem:[%s0 + $0x4] sm:$0xf]
    %v55 = vld [vmem:[%s0 + $0x8] sm:$0xf]
    %v56 = vld [vmem:[%s0 + $0xc] sm:$0xf]
    %v57 = vld [vmem:[%s0 + $0x10] sm:$0xf]
    %v58 = vld [vmem:[%s0 + $0x14] sm:$0xf]
    %v59 = vld [vmem:[%s0 + $0x18] sm:$0xf]
    %v60 = vld [vmem:[%s0 + $0x1c] sm:$0xf]
    %v61 = vld [vmem:[#allocation2] sm:$0xf]
    %v62 = vld [vmem:[%s2] sm:$0x1]
    %v64 = vlaneseq
    %v65 = vshrl.u32 %v64, 7
    %v66 = vsub.s32 0, %v65
    %v67 = vrot.slane %v62, %v66
    %v77 = vunpack.c.l.b16 %v53
    %v78 = vunpack.c.l.b16 %v54
    %v79 = vunpack.c.l.b16 %v55
    %v80 = vunpack.c.l.b16 %v56
    %v81 = vunpack.c.l.b16 %v57
    %v82 = vunpack.c.l.b16 %v58
    %v83 = vunpack.c.l.b16 %v59
    %v84 = vunpack.c.l.b16 %v60
    %v85 = vpack.c.b16 %v78, %v77
    %v86 = vpack.c.b16 %v80, %v79
    %v87 = vpack.c.b16 %v82, %v81
    %v88 = vpack.c.b16 %v84, %v83
    %vm89 = vcmask 64512
    %v91 = vsel %vm89, %v85, 0
    %v94 = vsel %vm89, %v86, 0
    %v97 = vsel %vm89, %v87, 0
    %v100 = vsel %vm89, %v88, 0
    %vm102 = vcmask 1043456
    %v104 = vsel %vm102, %v61, 0
    %106 = vmatprep.subr.bf16.mxu0 0
    %107 = vmatpush1.bf16.msra.mxu0 %v104
    %108 = vmatprep.subr.bf16.mxu0 0
    %109 = vmatpush1.bf16.msra.mxu0 0
    %110 = vmatprep.subr.bf16.mxu0 0
    %111 = vmatpush1.bf16.msra.mxu0 0
    %112 = vmatprep.subr.bf16.mxu0 0
    %113 = vmatpush1.bf16.msra.mxu0 0
    %114 = vmatprep.subr.bf16.mxu0 0
    %115 = vmatpush1.bf16.msra.mxu0 0
    %116 = vmatprep.subr.bf16.mxu0 0
    %117 = vmatpush1.bf16.msra.mxu0 0
    %118 = vmatprep.subr.bf16.mxu0 0
    %119 = vmatpush1.bf16.msra.mxu0 0
    %120 = vmatprep.subr.bf16.mxu0 0
    %121 = vmatpush1.bf16.msra.mxu0 0
    %122 = vmatprep.subr.bf16.mxu0 0
    %123 = vmatpush1.bf16.msra.mxu0 0
    %124 = vmatprep.subr.bf16.mxu0 0
    %125 = vmatpush1.bf16.msra.mxu0 0
    %126 = vmatprep.subr.bf16.mxu0 0
    %127 = vmatpush1.bf16.msra.mxu0 0
    %128 = vmatprep.subr.bf16.mxu0 0
    %129 = vmatpush1.bf16.msra.mxu0 0
    %130 = vmatprep.subr.bf16.mxu0 0
    %131 = vmatpush1.bf16.msra.mxu0 0
    %132 = vmatprep.subr.bf16.mxu0 0
    %133 = vmatpush1.bf16.msra.mxu0 0
    %134 = vmatprep.subr.bf16.mxu0 0
    %135 = vmatpush1.bf16.msra.mxu0 0
    %136 = vmatprep.subr.bf16.mxu0 0
    %137 = vmatpush1.bf16.msra.mxu0 0
    %138 = vmatprep.mubr.bf16.mxu0 0
    %139 = vmatmul.mubr.bf16.gmra.mrb[0].mxu0 %v91
    %v140 = vpop.f32.mrb[0].mxu0
    %v141 = vadd.f32 %v67, %v140
    %v142 = vpop.f32.mrb[0].mxu0
    %v143 = vpop.f32.mrb[0].mxu0
    %v144 = vadd.f32 %v67, %v143
    %v145 = vpop.f32.mrb[0].mxu0
    %146 = vmatprep.mubr.bf16.mxu0 0
    %147 = vmatmul.mubr.bf16.gmra.mrb[0].mxu0 %v94
    %v148 = vpop.f32.mrb[0].mxu0
    %v149 = vadd.f32 %v67, %v148
    %v150 = vpop.f32.mrb[0].mxu0
    %v151 = vpop.f32.mrb[0].mxu0
    %v152 = vadd.f32 %v67, %v151
    %v153 = vpop.f32.mrb[0].mxu0
    %154 = vmatprep.mubr.bf16.mxu0 0
    %155 = vmatmul.mubr.bf16.gmra.mrb[0].mxu0 %v97
    %v156 = vpop.f32.mrb[0].mxu0
    %v157 = vadd.f32 %v67, %v156
    %v158 = vpop.f32.mrb[0].mxu0
    %v159 = vpop.f32.mrb[0].mxu0
    %v160 = vadd.f32 %v67, %v159
    %v161 = vpop.f32.mrb[0].mxu0
    %162 = vmatprep.mubr.bf16.mxu0 0
    %163 = vmatmul.mubr.bf16.gmra.mrb[0].mxu0 %v100
    %v164 = vpop.f32.mrb[0].mxu0
    %v165 = vadd.f32 %v67, %v164
    %v166 = vpop.f32.mrb[0].mxu0
    %v167 = vpop.f32.mrb[0].mxu0
    %v168 = vadd.f32 %v67, %v167
    %v169 = vpop.f32.mrb[0].mxu0
    %170 = vdwg.mxu0
    %v171 = vmax.f32 %v141, 0.0
    %v172 = vmax.f32 %v144, 0.0
    %v173 = vmax.f32 %v149, 0.0
    %v174 = vmax.f32 %v152, 0.0
    %v175 = vmax.f32 %v157, 0.0
    %v176 = vmax.f32 %v160, 0.0
    %v177 = vmax.f32 %v165, 0.0
    %v178 = vmax.f32 %v168, 0.0
    %v179 = vpack.c.bf16 %v172, %v171
    %v180 = vpack.c.bf16 %v174, %v173
    %v181 = vpack.c.bf16 %v176, %v175
    %v182 = vpack.c.bf16 %v178, %v177
    %v183 = vld [vmem:[#allocation4] sm:$0xf]
    %v184 = vld [vmem:[#allocation4 + $0x4] sm:$0xf]
    %v185 = vld [vmem:[#allocation4 + $0x8] sm:$0xf]
    %v186 = vld [vmem:[#allocation4 + $0xc] sm:$0xf]
    %v187 = vld [vmem:[#allocation4 + $0x10] sm:$0xf]
    %v188 = vld [vmem:[#allocation4 + $0x14] sm:$0xf]
    %v189 = vld [vmem:[#allocation4 + $0x18] sm:$0xf]
    %v190 = vld [vmem:[#allocation4 + $0x1c] sm:$0xf]
    %v191 = vld [vmem:[#allocation4 + $0x20] sm:$0xf]
    %v192 = vld [vmem:[#allocation4 + $0x24] sm:$0xf]
    %v193 = vld [vmem:[#allocation4 + $0x28] sm:$0xf]
    %v194 = vld [vmem:[#allocation4 + $0x2c] sm:$0xf]
    %v195 = vld [vmem:[#allocation4 + $0x30] sm:$0xf]
    %v196 = vld [vmem:[#allocation4 + $0x34] sm:$0xf]
    %v197 = vld [vmem:[#allocation4 + $0x38] sm:$0xf]
    %v198 = vld [vmem:[#allocation4 + $0x3c] sm:$0xf]
    %v199 = vld [vmem:[%s4] sm:$0x1]
    %v201 = vlaneseq
    %v202 = vshrl.u32 %v201, 7
    %v203 = vsub.s32 0, %v202
    %v204 = vrot.slane %v199, %v203
    %v222 = vunpack.c.l.b16 %v183
    %v223 = vunpack.c.l.b16 %v184
    %v224 = vunpack.c.l.b16 %v185
    %v225 = vunpack.c.l.b16 %v186
    %v226 = vunpack.c.l.b16 %v187
    %v227 = vunpack.c.l.b16 %v188
    %v228 = vunpack.c.l.b16 %v189
    %v229 = vunpack.c.l.b16 %v190
    %v230 = vunpack.c.l.b16 %v191
    %v231 = vunpack.c.l.b16 %v192
    %v232 = vunpack.c.l.b16 %v193
    %v233 = vunpack.c.l.b16 %v194
    %v234 = vunpack.c.l.b16 %v195
    %v235 = vunpack.c.l.b16 %v196
    %v236 = vunpack.c.l.b16 %v197
    %v237 = vunpack.c.l.b16 %v198
    %v238 = vpack.c.b16 %v223, %v222
    %v239 = vpack.c.b16 %v225, %v224
    %v240 = vpack.c.b16 %v227, %v226
    %v241 = vpack.c.b16 %v229, %v228
    %v242 = vpack.c.b16 %v231, %v230
    %v243 = vpack.c.b16 %v233, %v232
    %v244 = vpack.c.b16 %v235, %v234
    %v245 = vpack.c.b16 %v237, %v236
    %254 = vmatprep.subr.bf16.mxu0 0
    %255 = vmatpush1.bf16.msra.mxu0 %v238
    %256 = vmatprep.subr.bf16.mxu0 0
    %257 = vmatpush1.bf16.msra.mxu0 %v239
    %258 = vmatprep.subr.bf16.mxu0 0
    %259 = vmatpush1.bf16.msra.mxu0 %v240
    %260 = vmatprep.subr.bf16.mxu0 0
    %261 = vmatpush1.bf16.msra.mxu0 %v241
    %262 = vmatprep.subr.bf16.mxu0 0
    %263 = vmatpush1.bf16.msra.mxu0 %v242
    %264 = vmatprep.subr.bf16.mxu0 0
    %265 = vmatpush1.bf16.msra.mxu0 %v243
    %266 = vmatprep.subr.bf16.mxu0 0
    %267 = vmatpush1.bf16.msra.mxu0 %v244
    %268 = vmatprep.subr.bf16.mxu0 0
    %269 = vmatpush1.bf16.msra.mxu0 %v245
    %270 = vmatprep.subr.bf16.mxu0 0
    %271 = vmatpush1.bf16.msra.mxu0 0
    %272 = vmatprep.subr.bf16.mxu0 0
    %273 = vmatpush1.bf16.msra.mxu0 0
    %274 = vmatprep.subr.bf16.mxu0 0
    %275 = vmatpush1.bf16.msra.mxu0 0
    %276 = vmatprep.subr.bf16.mxu0 0
    %277 = vmatpush1.bf16.msra.mxu0 0
    %278 = vmatprep.subr.bf16.mxu0 0
    %279 = vmatpush1.bf16.msra.mxu0 0
    %280 = vmatprep.subr.bf16.mxu0 0
    %281 = vmatpush1.bf16.msra.mxu0 0
    %282 = vmatprep.subr.bf16.mxu0 0
    %283 = vmatpush1.bf16.msra.mxu0 0
    %284 = vmatprep.subr.bf16.mxu0 0
    %285 = vmatpush1.bf16.msra.mxu0 0
    %286 = vmatprep.mubr.bf16.mxu0 0
    %287 = vmatmul.mubr.bf16.gmra.mrb[0].mxu0 %v179
    %v288 = vpop.f32.mrb[0].mxu0
    %v289 = vadd.f32 %v204, %v288
    %v290 = vpop.f32.mrb[0].mxu0
    %v291 = vpop.f32.mrb[0].mxu0
    %v292 = vadd.f32 %v204, %v291
    %v293 = vpop.f32.mrb[0].mxu0
    %294 = vmatprep.mubr.bf16.mxu0 0
    %295 = vmatmul.mubr.bf16.gmra.mrb[0].mxu0 %v180
    %v296 = vpop.f32.mrb[0].mxu0
    %v297 = vadd.f32 %v204, %v296
    %v298 = vpop.f32.mrb[0].mxu0
    %v299 = vpop.f32.mrb[0].mxu0
    %v300 = vadd.f32 %v204, %v299
    %v301 = vpop.f32.mrb[0].mxu0
    %302 = vmatprep.mubr.bf16.mxu0 0
    %303 = vmatmul.mubr.bf16.gmra.mrb[0].mxu0 %v181
    %v304 = vpop.f32.mrb[0].mxu0
    %v305 = vadd.f32 %v204, %v304
    %v306 = vpop.f32.mrb[0].mxu0
    %v307 = vpop.f32.mrb[0].mxu0
    %v308 = vadd.f32 %v204, %v307
    %v309 = vpop.f32.mrb[0].mxu0
    %310 = vmatprep.mubr.bf16.mxu0 0
    %311 = vmatmul.mubr.bf16.gmra.mrb[0].mxu0 %v182
    %v312 = vpop.f32.mrb[0].mxu0
    %v313 = vadd.f32 %v204, %v312
    %v314 = vpop.f32.mrb[0].mxu0
    %v315 = vpop.f32.mrb[0].mxu0
    %v316 = vadd.f32 %v204, %v315
    %v317 = vpop.f32.mrb[0].mxu0
    %318 = vdwg.mxu0
    %v319 = vmax.f32 %v289, 0.0
    %v320 = vmax.f32 %v292, 0.0
    %v321 = vmax.f32 %v297, 0.0
    %v322 = vmax.f32 %v300, 0.0
    %v323 = vmax.f32 %v305, 0.0
    %v324 = vmax.f32 %v308, 0.0
    %v325 = vmax.f32 %v313, 0.0
    %v326 = vmax.f32 %v316, 0.0
    %v327 = vpack.c.bf16 %v320, %v319
    %v328 = vpack.c.bf16 %v322, %v321
    %v329 = vpack.c.bf16 %v324, %v323
    %v330 = vpack.c.bf16 %v326, %v325
    %v331 = vld [vmem:[%s5] sm:$0xf]
    %v332 = vld [vmem:[%s5 + $0x4] sm:$0xf]
    %v333 = vld [vmem:[%s5 + $0x8] sm:$0xf]
    %v334 = vld [vmem:[%s5 + $0xc] sm:$0xf]
    %v335 = vld [vmem:[%s5 + $0x10] sm:$0xf]
    %v336 = vld [vmem:[%s5 + $0x14] sm:$0xf]
    %v337 = vld [vmem:[%s5 + $0x18] sm:$0xf]
    %v338 = vld [vmem:[%s5 + $0x1c] sm:$0xf]
    %v339 = vld [vmem:[%s5 + $0x20] sm:$0xf]
    %v340 = vld [vmem:[%s5 + $0x24] sm:$0xf]
    %v341 = vld [vmem:[%s5 + $0x28] sm:$0xf]
    %v342 = vld [vmem:[%s5 + $0x2c] sm:$0xf]
    %v343 = vld [vmem:[%s5 + $0x30] sm:$0xf]
    %v344 = vld [vmem:[%s5 + $0x34] sm:$0xf]
    %v345 = vld [vmem:[%s5 + $0x38] sm:$0xf]
    %v346 = vld [vmem:[%s5 + $0x3c] sm:$0xf]
    %v347 = vld [vmem:[%s6] sm:$0x1]
    %v349 = vlaneseq
    %v350 = vshrl.u32 %v349, 7
    %v351 = vsub.s32 0, %v350
    %v352 = vrot.slane %v347, %v351
    %v370 = vunpack.c.l.b16 %v331
    %v371 = vunpack.c.l.b16 %v332
    %v372 = vunpack.c.l.b16 %v333
    %v373 = vunpack.c.l.b16 %v334
    %v374 = vunpack.c.l.b16 %v335
    %v375 = vunpack.c.l.b16 %v336
    %v376 = vunpack.c.l.b16 %v337
    %v377 = vunpack.c.l.b16 %v338
    %v378 = vunpack.c.l.b16 %v339
    %v379 = vunpack.c.l.b16 %v340
    %v380 = vunpack.c.l.b16 %v341
    %v381 = vunpack.c.l.b16 %v342
    %v382 = vunpack.c.l.b16 %v343
    %v383 = vunpack.c.l.b16 %v344
    %v384 = vunpack.c.l.b16 %v345
    %v385 = vunpack.c.l.b16 %v346
    %v386 = vpack.c.b16 %v371, %v370
    %v387 = vpack.c.b16 %v373, %v372
    %v388 = vpack.c.b16 %v375, %v374
    %v389 = vpack.c.b16 %v377, %v376
    %v390 = vpack.c.b16 %v379, %v378
    %v391 = vpack.c.b16 %v381, %v380
    %v392 = vpack.c.b16 %v383, %v382
    %v393 = vpack.c.b16 %v385, %v384
    %402 = vmatprep.subr.bf16.mxu0 0
    %403 = vmatpush1.bf16.msra.mxu0 %v386
    %404 = vmatprep.subr.bf16.mxu0 0
    %405 = vmatpush1.bf16.msra.mxu0 %v387
    %406 = vmatprep.subr.bf16.mxu0 0
    %407 = vmatpush1.bf16.msra.mxu0 %v388
    %408 = vmatprep.subr.bf16.mxu0 0
    %409 = vmatpush1.bf16.msra.mxu0 %v389
    %410 = vmatprep.subr.bf16.mxu0 0
    %411 = vmatpush1.bf16.msra.mxu0 %v390
    %412 = vmatprep.subr.bf16.mxu0 0
    %413 = vmatpush1.bf16.msra.mxu0 %v391
    %414 = vmatprep.subr.bf16.mxu0 0
    %415 = vmatpush1.bf16.msra.mxu0 %v392
    %416 = vmatprep.subr.bf16.mxu0 0
    %417 = vmatpush1.bf16.msra.mxu0 %v393
    %418 = vmatprep.subr.bf16.mxu0 0
    %419 = vmatpush1.bf16.msra.mxu0 0
    %420 = vmatprep.subr.bf16.mxu0 0
    %421 = vmatpush1.bf16.msra.mxu0 0
    %422 = vmatprep.subr.bf16.mxu0 0
    %423 = vmatpush1.bf16.msra.mxu0 0
    %424 = vmatprep.subr.bf16.mxu0 0
    %425 = vmatpush1.bf16.msra.mxu0 0
    %426 = vmatprep.subr.bf16.mxu0 0
    %427 = vmatpush1.bf16.msra.mxu0 0
    %428 = vmatprep.subr.bf16.mxu0 0
    %429 = vmatpush1.bf16.msra.mxu0 0
    %430 = vmatprep.subr.bf16.mxu0 0
    %431 = vmatpush1.bf16.msra.mxu0 0
    %432 = vmatprep.subr.bf16.mxu0 0
    %433 = vmatpush1.bf16.msra.mxu0 0
    %434 = vmatprep.mubr.bf16.mxu0 0
    %435 = vmatmul.mubr.bf16.gmra.mrb[0].mxu0 %v327
    %v436 = vpop.f32.mrb[0].mxu0
    %v437 = vadd.f32 %v352, %v436
    %v438 = vpop.f32.mrb[0].mxu0
    %v439 = vpop.f32.mrb[0].mxu0
    %v440 = vadd.f32 %v352, %v439
    %v441 = vpop.f32.mrb[0].mxu0
    %442 = vmatprep.mubr.bf16.mxu0 0
    %443 = vmatmul.mubr.bf16.gmra.mrb[0].mxu0 %v328
    %v444 = vpop.f32.mrb[0].mxu0
    %v445 = vadd.f32 %v352, %v444
    %v446 = vpop.f32.mrb[0].mxu0
    %v447 = vpop.f32.mrb[0].mxu0
    %v448 = vadd.f32 %v352, %v447
    %v449 = vpop.f32.mrb[0].mxu0
    %450 = vmatprep.mubr.bf16.mxu0 0
    %451 = vmatmul.mubr.bf16.gmra.mrb[0].mxu0 %v329
    %v452 = vpop.f32.mrb[0].mxu0
    %v453 = vadd.f32 %v352, %v452
    %v454 = vpop.f32.mrb[0].mxu0
    %v455 = vpop.f32.mrb[0].mxu0
    %v456 = vadd.f32 %v352, %v455
    %v457 = vpop.f32.mrb[0].mxu0
    %458 = vmatprep.mubr.bf16.mxu0 0
    %459 = vmatmul.mubr.bf16.gmra.mrb[0].mxu0 %v330
    %v460 = vpop.f32.mrb[0].mxu0
    %v461 = vadd.f32 %v352, %v460
    %v462 = vpop.f32.mrb[0].mxu0
    %v463 = vpop.f32.mrb[0].mxu0
    %v464 = vadd.f32 %v352, %v463
    %v465 = vpop.f32.mrb[0].mxu0
    %466 = vdwg.mxu0
    %v467 = vpack.c.bf16 %v440, %v437
    %v468 = vpack.c.bf16 %v448, %v445
    %v469 = vpack.c.bf16 %v456, %v453
    %v470 = vpack.c.bf16 %v464, %v461
    %v475 = vunpack.c.l.b16 %v467
    %v476 = vunpack.c.h.b16 %v467
    %v477 = vunpack.c.l.b16 %v468
    %v478 = vunpack.c.h.b16 %v468
    %v479 = vunpack.c.l.b16 %v469
    %v480 = vunpack.c.h.b16 %v469
    %v481 = vunpack.c.l.b16 %v470
    %v482 = vunpack.c.h.b16 %v470
    %v483 = vpack.c.b16 %v475, %v475
    %v484 = vpack.c.b16 %v476, %v476
    %v485 = vpack.c.b16 %v477, %v477
    %v486 = vpack.c.b16 %v478, %v478
    %v487 = vpack.c.b16 %v479, %v479
    %v488 = vpack.c.b16 %v480, %v480
    %v489 = vpack.c.b16 %v481, %v481
    %v490 = vpack.c.b16 %v482, %v482
    %499 = vst [vmem:[%s7] sm:$0xf] %v483
    %500 = vst [vmem:[%s7 + $0x4] sm:$0xf] %v484
    %501 = vst [vmem:[%s7 + $0x8] sm:$0xf] %v485
    %502 = vst [vmem:[%s7 + $0xc] sm:$0xf] %v486
    %503 = vst [vmem:[%s7 + $0x10] sm:$0xf] %v487
    %504 = vst [vmem:[%s7 + $0x14] sm:$0xf] %v488
    %505 = vst [vmem:[%s7 + $0x18] sm:$0xf] %v489
    %506 = vst [vmem:[%s7 + $0x1c] sm:$0xf] %v490
    // Predicated region
    $region38: #{_qnetwork_forward_padded.1} parent=1 // pred_check
      _
    $region39: #{_qnetwork_forward_padded.1} parent=1 // pred_check_branch
      %508 = sbr.rel (0) target = $region41
    $region40: #{_qnetwork_forward_padded.1} parent=1 // pred_region
      _
    $region41: #{_qnetwork_forward_padded.1} parent=1 // pred_fallthru
      _
    // Predicated region
    $region42: #{_qnetwork_forward_padded.1} parent=1 // pred_check
      _
    $region43: #{_qnetwork_forward_padded.1} parent=1 // pred_check_branch
      %510 = sbr.rel (0) target = $region45
    $region44: #{_qnetwork_forward_padded.1} parent=1 // pred_region
      _
    $region45: #{_qnetwork_forward_padded.1} parent=1 // pred_fallthru
      _
    %511 = vsyncpa [#allocation3], 1
    %512 = vsyncpa [#allocation5], 1

</llo_original>
